<compile_context>
chip_gen: v7x
topology: tpu7x:2x2x1
jax: 0.10.0
libtpu: 0.0.40
codegen_flags: <defaults>
</compile_context>

<pallas_src>
import functools

import jax
import jax.numpy as jnp
from jax.experimental import pallas as pl
from jax.experimental.pallas import tpu as pltpu

EPS = 1e-5  # torch.nn.GroupNorm default eps


# ----------------------------------------------------------------------------
# Kernels
# ----------------------------------------------------------------------------
def _gn_whole_kernel(x_ref, gb_ref, o_ref, *, eps):
    """One whole batch element per grid step.  Two-pass stats (numerically
    stable), affine folded into a single fused multiply-add per element."""
    x = x_ref[...].astype(jnp.float32)              # (1, rows, cols)
    mean = jnp.mean(x)
    var = jnp.mean(jnp.square(x - mean))            # transient inside reduce
    inv = jax.lax.rsqrt(var + eps)                  # EUP, off the VALU path
    gamma = gb_ref[0:1, :, :].astype(jnp.float32)   # (1, rows, 1)
    beta = gb_ref[1:2, :, :].astype(jnp.float32)    # (1, rows, 1)
    scale = gamma * inv                             # (1, rows, 1)
    shift = beta - mean * scale                     # (1, rows, 1)
    o_ref[...] = (x * scale + shift).astype(o_ref.dtype)


def _gn_stats_kernel(x_ref, stats_ref):
    """Phase 1 of the tiled path: accumulate sum / sum(x^2) per batch element.
    stats block (1, 2, 128) stays resident across the tile axis (accumulator);
    the scalars are broadcast across 128 lanes and read back as stats[:, i, 0]."""
    t = pl.program_id(1)

    @pl.when(t == 0)
    def _():
        stats_ref[...] = jnp.zeros_like(stats_ref)

    x = x_ref[...].astype(jnp.float32)              # (1, rows, tc)
    stats_ref[:, 0:1, :] += jnp.sum(x)
    stats_ref[:, 1:2, :] += jnp.sum(x * x)


def _gn_apply_kernel(x_ref, scale_ref, shift_ref, o_ref):
    """Phase 2 of the tiled path: out = x * scale + shift (per-row affine)."""
    x = x_ref[...].astype(jnp.float32)              # (1, rows, tc)
    o_ref[...] = (x * scale_ref[...] + shift_ref[...]).astype(o_ref.dtype)


# ----------------------------------------------------------------------------
# Layout / budgeting helpers
# ----------------------------------------------------------------------------
def _fold_sublanes(C, HW):
    """Fold spatial elements into the sublane axis while rows % 8 != 0 and the
    lane axis can stay a multiple of 128.  Returns (rows, cols, repeat)."""
    rows, cols, rep = C, HW, 1
    while rows % 8 != 0 and cols % 256 == 0:
        rows *= 2
        cols //= 2
        rep *= 2
    return rows, cols, rep


def _vmem_budget_bytes():
    cap = 64 * 1024 * 1024  # conservative default (v7x physical VMEM per core)
    try:
        info = pltpu.get_tpu_info()
        cap = int(getattr(info, "vmem_capacity_bytes", cap)) or cap
    except Exception:
        pass
    return int(cap) * 3 // 4


def _block_cost_bytes(rows, cols, itemsize):
    # double-buffered input + output blocks, plus f32 in-kernel temporaries
    return 4 * rows * cols * itemsize + 2 * rows * cols * 4


# ----------------------------------------------------------------------------
# pallas_call wrappers
# ----------------------------------------------------------------------------
def _gn_whole(x3, gamma_r, beta_r, eps):
    B, rows, cols = x3.shape
    gb = jnp.stack([gamma_r.astype(jnp.float32),
                    beta_r.astype(jnp.float32)]).reshape(2, rows, 1)

    est = _block_cost_bytes(rows, cols, x3.dtype.itemsize)
    vmem_limit = int(max(32 * 2**20, min(est + (4 << 20), 100 * 2**20)))

    return pl.pallas_call(
        functools.partial(_gn_whole_kernel, eps=eps),
        out_shape=jax.ShapeDtypeStruct((B, rows, cols), x3.dtype),
        grid=(B,),
        in_specs=[
            pl.BlockSpec((1, rows, cols), lambda b: (b, 0, 0)),
            pl.BlockSpec((2, rows, 1), lambda b: (0, 0, 0)),
        ],
        out_specs=pl.BlockSpec((1, rows, cols), lambda b: (b, 0, 0)),
        compiler_params=pltpu.CompilerParams(
            dimension_semantics=("parallel",),
            vmem_limit_bytes=vmem_limit,
        ),
    )(x3, gb)


def _gn_tiled(x3, gamma_r, beta_r, eps, budget):
    """Two-phase tiled path for blocks that do not fit VMEM (cols % 128 == 0).
    Phase 1: Pallas sum/sumsq reduction.  Tiny per-batch scale/shift math in
    plain JAX.  Phase 2: Pallas apply kernel."""
    B, rows, cols = x3.shape
    itemsize = x3.dtype.itemsize

    # Pick the widest lane tile (multiple of 128, divides cols) under budget.
    max_lanes = cols // 128
    tc = 128
    for k in range(max_lanes, 0, -1):
        if max_lanes % k != 0:
            continue
        cand = 128 * k
        if _block_cost_bytes(rows, cand, itemsize) <= budget // 2:
            tc = cand
            break
    n_t = cols // tc
    tile_est = _block_cost_bytes(rows, tc, itemsize)
    vmem_limit = int(max(32 * 2**20, tile_est + (2 << 20)))

    stats = pl.pallas_call(
        _gn_stats_kernel,
        out_shape=jax.ShapeDtypeStruct((B, 2, 128), jnp.float32),
        grid=(B, n_t),
        in_specs=[pl.BlockSpec((1, rows, tc), lambda b, t: (b, 0, t))],
        out_specs=pl.BlockSpec((1, 2, 128), lambda b, t: (b, 0, 0)),
        compiler_params=pltpu.CompilerParams(
            dimension_semantics=("parallel", "arbitrary"),
            vmem_limit_bytes=vmem_limit,
        ),
    )(x3)

    n = float(rows * cols)
    ssum = stats[:, 0, 0]                                   # (B,)
    ssq = stats[:, 1, 0]                                    # (B,)
    mean = ssum / n
    var = jnp.maximum(ssq / n - mean * mean, 0.0)
    inv = jax.lax.rsqrt(var + eps)
    g = gamma_r.astype(jnp.float32)
    b_ = beta_r.astype(jnp.float32)
    scale = g[None, :] * inv[:, None]                       # (B, rows)
    shift = b_[None, :] - mean[:, None] * scale             # (B, rows)
    scale3 = scale.reshape(B, rows, 1)
    shift3 = shift.reshape(B, rows, 1)

    return pl.pallas_call(
        _gn_apply_kernel,
        out_shape=jax.ShapeDtypeStruct((B, rows, cols), x3.dtype),
        grid=(B, n_t),
        in_specs=[
            pl.BlockSpec((1, rows, tc), lambda b, t: (b, 0, t)),
            pl.BlockSpec((1, rows, 1), lambda b, t: (b, 0, 0)),
            pl.BlockSpec((1, rows, 1), lambda b, t: (b, 0, 0)),
        ],
        out_specs=pl.BlockSpec((1, rows, tc), lambda b, t: (b, 0, t)),
        compiler_params=pltpu.CompilerParams(
            dimension_semantics=("parallel", "parallel"),
            vmem_limit_bytes=vmem_limit,
        ),
    )(x3, scale3, shift3)


def groupnorm1(x_nchw, gamma, beta, eps=EPS):
    """GroupNorm(num_groups=1, num_channels=C) over an NCHW tensor."""
    B, C, H, W = x_nchw.shape
    HW = H * W
    rows, cols, rep = _fold_sublanes(C, HW)
    x3 = x_nchw.reshape(B, rows, cols)
    gamma_r = jnp.repeat(gamma.astype(jnp.float32), rep)    # (rows,)
    beta_r = jnp.repeat(beta.astype(jnp.float32), rep)      # (rows,)

    budget = _vmem_budget_bytes()
    est = _block_cost_bytes(rows, cols, x_nchw.dtype.itemsize)

    # TODO(synk): if est > budget AND cols % 128 != 0 (huge element with odd
    # spatial size), pad the lane axis to a multiple of 128 before tiling.
    if est <= budget or cols % 128 != 0:
        out3 = _gn_whole(x3, gamma_r, beta_r, eps)
    else:
        out3 = _gn_tiled(x3, gamma_r, beta_r, eps, budget)
    return out3.reshape(B, C, H, W)


class PreNorm:
    """JAX/Pallas equivalent of the PyTorch PreNorm module."""

    def __init__(self, dim, fn):
        self.fn = fn
        # nn.GroupNorm(1, dim) affine params: weight=ones, bias=zeros (default)
        self.gamma = jnp.ones((dim,), jnp.float32)
        self.beta = jnp.zeros((dim,), jnp.float32)

    def __call__(self, x):
        x = groupnorm1(x, self.gamma, self.beta)   # Pallas hot path
        # TODO(synk): fuse the leading elementwise ops (or first projection) of
        # the wrapped `fn` into the kernel epilogue to save an HBM round trip;
        # `fn` is arbitrary here so it remains plain-JAX glue.
        return self.fn(x)


if __name__ == "__main__":
    key = jax.random.PRNGKey(0)
    B, C, H, W = 2, 4, 16, 16
    x = jax.random.normal(key, (B, C, H, W), dtype=jnp.float32)

    model = PreNorm(C, fn=lambda y: y)
    out = model(x)
    jax.block_until_ready(out)

    # Reference: plain-JAX GroupNorm(1, C)
    mean = jnp.mean(x, axis=(1, 2, 3), keepdims=True)
    var = jnp.mean((x - mean) ** 2, axis=(1, 2, 3), keepdims=True)
    ref = (x - mean) / jnp.sqrt(var + EPS)
    ref = ref * model.gamma.reshape(1, C, 1, 1) + model.beta.reshape(1, C, 1, 1)
    assert out.shape == (B, C, H, W)
    assert jnp.max(jnp.abs(out - ref)) < 1e-4

    # Also exercise the VMEM-budgeted two-phase tiled fallback (forced via a
    # tiny budget) and check that it matches the reference too.
    rows, cols, rep = _fold_sublanes(C, H * W)
    x3 = x.reshape(B, rows, cols)
    g_r = jnp.repeat(model.gamma, rep)
    b_r = jnp.repeat(model.beta, rep)
    out_tiled = _gn_tiled(x3, g_r, b_r, EPS, budget=64 * 1024).reshape(B, C, H, W)
    jax.block_until_ready(out_tiled)
    assert jnp.max(jnp.abs(out_tiled - ref)) < 1e-4

    print("KERNEL_OK")
</pallas_src>

<mosaic_0001>
module attributes {stable_mosaic.version = 11 : i64} {
  func.func @_gn_whole_kernel(%arg0: i32, %arg1: memref<1x8x128xf32, #tpu.memory_space<vmem>>, %arg2: memref<2x8x1xf32, #tpu.memory_space<vmem>>, %arg3: memref<1x8x128xf32, #tpu.memory_space<vmem>>) attributes {dimension_semantics = [#tpu.dimension_semantics<parallel>], iteration_bounds = array<i64: 2>, scalar_prefetch = 0 : i64, scratch_operands = 0 : i64, tpu.core_type = #tpu.core_type<tc>, window_params = [{transform_indices = @transform_0, window_bounds = array<i64: 1, 8, 128>}, {pipeline_mode = #tpu.pipeline_mode<synchronous>, transform_indices = @transform_1, window_bounds = array<i64: 2, 8, 1>}, {transform_indices = @transform_2, window_bounds = array<i64: 1, 8, 128>}]} {
    %c0 = arith.constant 0 : index
    %c0_0 = arith.constant 0 : index
    %c0_1 = arith.constant 0 : index
    %0 = vector.load %arg1[%c0, %c0_0, %c0_1] : memref<1x8x128xf32, #tpu.memory_space<vmem>>, vector<1x8x128xf32>
    %1 = vector.shape_cast %0 : vector<1x8x128xf32> to vector<1x1x8x128xf32>
    %cst = arith.constant dense<0.000000e+00> : vector<1xf32>
    %2 = vector.multi_reduction <add>, %1, %cst [1, 2, 3] : vector<1x1x8x128xf32> to vector<1xf32>
    %3 = vector.shape_cast %2 : vector<1xf32> to vector<1x1x1x1xf32>
    %4 = vector.extract %3[0, 0, 0, 0] : f32 from vector<1x1x1x1xf32>
    %cst_2 = arith.constant 1.024000e+03 : f32
    %5 = arith.divf %4, %cst_2 : f32
    %6 = vector.broadcast %5 : f32 to vector<1x8x128xf32>
    %7 = arith.subf %0, %6 : vector<1x8x128xf32>
    %8 = arith.mulf %7, %7 : vector<1x8x128xf32>
    %9 = vector.shape_cast %8 : vector<1x8x128xf32> to vector<1x1x8x128xf32>
    %cst_3 = arith.constant dense<0.000000e+00> : vector<1xf32>
    %10 = vector.multi_reduction <add>, %9, %cst_3 [1, 2, 3] : vector<1x1x8x128xf32> to vector<1xf32>
    %11 = vector.shape_cast %10 : vector<1xf32> to vector<1x1x1x1xf32>
    %12 = vector.extract %11[0, 0, 0, 0] : f32 from vector<1x1x1x1xf32>
    %cst_4 = arith.constant 1.024000e+03 : f32
    %13 = arith.divf %12, %cst_4 : f32
    %cst_5 = arith.constant 9.99999974E-6 : f32
    %14 = arith.addf %13, %cst_5 : f32
    %15 = math.rsqrt %14 : f32
    %c0_6 = arith.constant 0 : index
    %c0_7 = arith.constant 0 : index
    %c0_8 = arith.constant 0 : index
    %16 = vector.load %arg2[%c0_6, %c0_7, %c0_8] : memref<2x8x1xf32, #tpu.memory_space<vmem>>, vector<1x8x1xf32>
    %c1 = arith.constant 1 : index
    %c0_9 = arith.constant 0 : index
    %c0_10 = arith.constant 0 : index
    %17 = vector.load %arg2[%c1, %c0_9, %c0_10] : memref<2x8x1xf32, #tpu.memory_space<vmem>>, vector<1x8x1xf32>
    %18 = vector.broadcast %15 : f32 to vector<1x8x1xf32>
    %19 = arith.mulf %16, %18 : vector<1x8x1xf32>
    %20 = vector.broadcast %5 : f32 to vector<1x8x1xf32>
    %21 = arith.mulf %20, %19 : vector<1x8x1xf32>
    %22 = arith.subf %17, %21 : vector<1x8x1xf32>
    %23 = vector.broadcast %19 : vector<1x8x1xf32> to vector<1x8x128xf32>
    %24 = arith.mulf %0, %23 : vector<1x8x128xf32>
    %25 = vector.broadcast %22 : vector<1x8x1xf32> to vector<1x8x128xf32>
    %26 = arith.addf %24, %25 : vector<1x8x128xf32>
    %c0_11 = arith.constant 0 : index
    %c0_12 = arith.constant 0 : index
    %c0_13 = arith.constant 0 : index
    %27 = vector.load %arg3[%c0_11, %c0_12, %c0_13] : memref<1x8x128xf32, #tpu.memory_space<vmem>>, vector<1x8x128xf32>
    tpu.vector_store %arg3[%c0_11, %c0_12, %c0_13], %26 {strides = array<i32>} : memref<1x8x128xf32, #tpu.memory_space<vmem>>, vector<1x8x128xf32>,
    return
  }
  func.func @transform_0(%arg0: i32) -> (i32, i32, i32) {
    %c0_i32 = arith.constant 0 : i32
    %c0_i32_0 = arith.constant 0 : i32
    %c0_i32_1 = arith.constant 0 : i32
    return %arg0, %c0_i32, %c0_i32_0 : i32, i32, i32
  }
  func.func @transform_1(%arg0: i32) -> (i32, i32, i32) {
    %c0_i32 = arith.constant 0 : i32
    %c0_i32_0 = arith.constant 0 : i32
    %c0_i32_1 = arith.constant 0 : i32
    %c0_i32_2 = arith.constant 0 : i32
    return %c0_i32, %c0_i32_0, %c0_i32_1 : i32, i32, i32
  }
  func.func @transform_2(%arg0: i32) -> (i32, i32, i32) {
    %c0_i32 = arith.constant 0 : i32
    %c0_i32_0 = arith.constant 0 : i32
    %c0_i32_1 = arith.constant 0 : i32
    return %arg0, %c0_i32, %c0_i32_0 : i32, i32, i32
  }
}

</mosaic_0001>

<llo_original>
// kernel: tpu_custom_call.1
$region0: #{tpu_custom_call.1}
  #allocation0 [shape = 'u32[]', space=smem, size = 0x4, offset = 0x4, fixed_abs, tag = 'smem constant byte address 0x4 - core index']
  #allocation1 [shape = 'u32[144,128]{1,0:T(1,128)}', space=vmem, size = 0x12000, scoped, tag = 'internal scratch']
  %s0 = inlined_call_operand.vmem [shape: f32[2,8,128], index: 0, kind: input, shape index: {}]
  %s1 = inlined_call_operand.vmem [shape: f32[2,8,1], index: 1, kind: input, shape index: {}]
  %s2 = inlined_call_operand.hbm [shape: f32[2,8,128], index: 2, kind: output, shape index: {}]
  %s3 = sld [smem:[#allocation0]]
  $region41: #{tpu_custom_call.1} parent=0
    _
  %s5 = ssub.s32 1, %s3
  %s6 = scalar_select 0, %s5, %s3
  $region1: #{tpu_custom_call.1} parent=0
    #allocation2 [shape = 'u8[8192]{0}', space=vmem, size = 0x2000, scoped, tag = 'output window, operand 0']
    #allocation3 [shape = 's32[2]{0}', space=sflag, size = 0x8, scoped, tag = 'scoped memory for tpu_custom_call.1']
    %7 = vsyncpa [#allocation3], 0
    %s8 = scalar_lea.sflag [#allocation3], 1
    %9 = vsyncpa %s8, 0
    loop: start=0, step=1, limit=4
    $region2: #{tpu_custom_call.1} parent=1 // loop_pre_header
      _
    $region3: #{tpu_custom_call.1} parent=1 // loop_header
      %s11 = sphi 0, %s15
      %p12 = scmp.ge.s32.totalorder %s11, 4
      %s21 = sphi 0, %s23
      %s24 = sphi 0, %s21
      %s25 = sphi 0, %s24
      %s41 = sphi 0, %s25
      %s45 = sphi 0, %s45
      %s47 = sphi 0, %s45
      %s48 = sphi 0, %s47
      %s62 = sphi 0, %s48
      %s68 = sphi 0, %s70
      %s71 = sphi 0, %s68
      %s72 = sphi 0, %s71
      %s88 = sphi 0, %s72
    $region4: #{tpu_custom_call.1} parent=1 // loop_header_branch
      %14 = sbr.rel (%p12) target = $region8
    $region5: #{tpu_custom_call.1} parent=1 // loop_body
      %s16 = ssub.s32 %s11, 1
      %s17 = ssub.s32 %s11, 2
      %s18 = sadd.s32 %s11, 1
      %s19 = ssub.s32 %s11, %s18
      %p20 = scmp.eq.s32.totalorder %s19, 0
      %s22 = sadd.s32 %s21, 1
      %s23 = scalar_select %p20, %s21, %s22
      %p26 = pneg %p20
      %p27 = scmp.eq.s32.totalorder %s11, 1
      %p28 = por %p26, %p27
      %p29 = scmp.ne.s32.totalorder %s21, %s24
      %p30 = scmp.eq.s32.totalorder %s11, 0
      %p31 = por %p29, %p30
      %p32 = scmp.ne.s32.totalorder %s21, %s24
      %p33 = scmp.eq.s32.totalorder %s16, 1
      %p34 = por %p32, %p33
      %p35 = scmp.ne.s32.totalorder %s24, %s25
      %p36 = scmp.eq.s32.totalorder %s16, 0
      %p37 = por %p35, %p36
      %p38 = scmp.ne.s32.totalorder %s24, %s25
      %p39 = scmp.eq.s32.totalorder %s17, 1
      %p40 = por %p38, %p39
      %p42 = scmp.ne.s32.totalorder %s25, %s41
      %p43 = scmp.eq.s32.totalorder %s17, 0
      %p44 = por %p42, %p43
      %s46 = sadd.s32 %s45, 1
      %p49 = scmp.eq.s32.totalorder %s11, 1
      %p50 = scmp.ne.s32.totalorder %s45, %s47
      %p51 = scmp.eq.s32.totalorder %s11, 0
      %p52 = por %p50, %p51
      %p53 = scmp.ne.s32.totalorder %s45, %s47
      %p54 = scmp.eq.s32.totalorder %s16, 1
      %p55 = por %p53, %p54
      %p56 = scmp.ne.s32.totalorder %s47, %s48
      %p57 = scmp.eq.s32.totalorder %s16, 0
      %p58 = por %p56, %p57
      %p59 = scmp.ne.s32.totalorder %s47, %s48
      %p60 = scmp.eq.s32.totalorder %s17, 1
      %p61 = por %p59, %p60
      %p63 = scmp.ne.s32.totalorder %s48, %s62
      %p64 = scmp.eq.s32.totalorder %s17, 0
      %p65 = por %p63, %p64
      %s66 = ssub.s32 %s11, %s18
      %p67 = scmp.eq.s32.totalorder %s66, 0
      %s69 = sadd.s32 %s68, 1
      %s70 = scalar_select %p67, %s68, %s69
      %p73 = pneg %p67
      %p74 = scmp.eq.s32.totalorder %s11, 1
      %p75 = por %p73, %p74
      %p76 = scmp.ne.s32.totalorder %s68, %s71
      %p77 = scmp.eq.s32.totalorder %s11, 0
      %p78 = por %p76, %p77
      %p79 = scmp.ne.s32.totalorder %s68, %s71
      %p80 = scmp.eq.s32.totalorder %s16, 1
      %p81 = por %p79, %p80
      %p82 = scmp.ne.s32.totalorder %s71, %s72
      %p83 = scmp.eq.s32.totalorder %s16, 0
      %p84 = por %p82, %p83
      %p85 = scmp.ne.s32.totalorder %s71, %s72
      %p86 = scmp.eq.s32.totalorder %s17, 1
      %p87 = por %p85, %p86
      %p89 = scmp.ne.s32.totalorder %s72, %s88
      %p90 = scmp.eq.s32.totalorder %s17, 0
      %p91 = por %p89, %p90
      %p92 = scmp.le.s32.totalorder 1, %s11
      %p93 = scmp.lt.s32.totalorder %s11, 3
      %p94 = pnand %p92, %p93
      %p95 = pneg %p94
      // Predicated region
      $region9: #{tpu_custom_call.1} parent=5 // pred_check
        _
      $region10: #{tpu_custom_call.1} parent=5 // pred_check_branch
        %97 = sbr.rel (%p94) target = $region12
      $region11: #{tpu_custom_call.1} parent=5 // pred_region
        %s98 = ssub.s32 %s11, 1
        // Predicated region
        $region13: #{tpu_custom_call.1} parent=11 // pred_check
          %p99 = pneg %p58
        $region14: #{tpu_custom_call.1} parent=11 // pred_check_branch
          %101 = sbr.rel (%p99) target = $region16
        $region15: #{tpu_custom_call.1} parent=11 // pred_region
          _
        $region16: #{tpu_custom_call.1} parent=11 // pred_fallthru
          _
      $region12: #{tpu_custom_call.1} parent=5 // pred_fallthru
        _
      %p102 = scmp.lt.s32.totalorder %s11, 2
      // Predicated region
      $region17: #{tpu_custom_call.1} parent=5 // pred_check
        %p103 = pneg %p102
      $region18: #{tpu_custom_call.1} parent=5 // pred_check_branch
        %105 = sbr.rel (%p103) target = $region20
      $region19: #{tpu_custom_call.1} parent=5 // pred_region
        // Predicated region
        $region21: #{tpu_custom_call.1} parent=19 // pred_check
          %p106 = pneg %p31
        $region22: #{tpu_custom_call.1} parent=19 // pred_check_branch
          %108 = sbr.rel (%p106) target = $region24
        $region23: #{tpu_custom_call.1} parent=19 // pred_region
          %p109 = scmp.lt.s32.totalorder %s11, 1
          %s110 = scalar_select %p109, %s11, 1
          %s111 = smul.addr %s110, 8
          %s112 = scalar_lea.vmem %s0, %s111
        $region24: #{tpu_custom_call.1} parent=19 // pred_fallthru
          _
      $region20: #{tpu_custom_call.1} parent=5 // pred_fallthru
        _
      %p113 = scmp.le.s32.totalorder 1, %s11
      %p114 = scmp.lt.s32.totalorder %s11, 3
      %p115 = pnand %p113, %p114
      %p116 = pneg %p115
      // Predicated region
      $region25: #{tpu_custom_call.1} parent=5 // pred_check
        _
      $region26: #{tpu_custom_call.1} parent=5 // pred_check_branch
        %118 = sbr.rel (%p115) target = $region28
      $region27: #{tpu_custom_call.1} parent=5 // pred_region
        %s119 = ssub.s32 %s11, 1
        %p120 = scmp.lt.s32.totalorder %s16, 1
        %s121 = scalar_select %p120, %s16, 1
        %s122 = smul.addr %s121, 8
        %s123 = scalar_lea.vmem %s0, %s122
        %p124 = pneg %p37
        %p125 = pneg %p34
        %p126 = pneg %p58
        %p127 = pneg %p55
        %p128 = pneg %p84
        %p129 = pneg %p81
        %s130 = sand.u32 %s71, 1
        %s131 = scalar_lea.sflag [#allocation3], %s130
        %s132 = sand.u32 %s71, 1
        %s133 = smul.addr %s132, 8
        %s134 = scalar_lea.vmem [#allocation2], %s133
        %p135 = scmp.lt.s32.totalorder %s16, 1
        %s136 = scalar_select %p135, %s16, 1
        %s137 = smul.addr %s136, 8
        %s138 = scalar_lea.vmem %s0, %s137
        %v139 = vld [vmem:[%s138] sm:$0xff]
        %140 = vadd.xlane.f32.xlu0 %v139
        %v141 = vpop.xlane.xlu0 %140
        %v142 = vrot.slane %v141, 4
        %v143 = vadd.f32 %v141, %v142
        %v144 = vrot.slane %v143, 2
        %v145 = vadd.f32 %v143, %v144
        %v146 = vrot.slane %v145, 1
        %v147 = vadd.f32 %v145, %v146
        %s148 = vtos %v147
        %v149 = vrcp.pop 1024.0
        %s150 = vtos %v149
        %s151 = smul.f32 %s148, %s150
        %v152 = vstv %s151
        %v153 = vsub.f32 %v139, %v152
        %v154 = vmul.f32 %v153, %v153
        %155 = vadd.xlane.f32.xlu0 %v154
        %v156 = vpop.xlane.xlu0 %155
        %v157 = vrot.slane %v156, 4
        %v158 = vadd.f32 %v156, %v157
        %v159 = vrot.slane %v158, 2
        %v160 = vadd.f32 %v158, %v159
        %v161 = vrot.slane %v160, 1
        %v162 = vadd.f32 %v160, %v161
        %s163 = vtos %v162
        %v164 = vrcp.pop 1024.0
        %s165 = vtos %v164
        %s166 = smul.f32 %s163, %s165
        %s167 = sadd.f32 %s166, 1e-05
        %v168 = vstv %s167
        %v169 = vrsqrt.pop %v168
        %s170 = vtos %v169
        %v171 = vld [vmem:[%s1] sm:$0xff]
        %s172 = scalar_lea.vmem %s1, 8
        %v173 = vld [vmem:[%s172] sm:$0xff]
        %v174 = vstv %s170
        %v175 = vmul.f32 %v171, %v174
        %v176 = vmul.f32 %v152, %v175
        %v177 = vsub.f32 %v173, %v176
        %179 = vset.pattern.permute.xlu0 0
        %180 = vperm.xlu0 %179, %v175
        %v181 = vpop.permute.xlu0 %180
        %v183 = vmul.f32 %v139, %v181
        %185 = vset.pattern.permute.xlu0 0
        %186 = vperm.xlu0 %185, %v177
        %v187 = vpop.permute.xlu0 %186
        %v189 = vadd.f32 %v183, %v187
        %190 = vst [vmem:[%s134] sm:$0xff] %v189
        %s191 = sand.u32 %s71, 1
        %s192 = scalar_lea.sflag [#allocation3], %s191
        %s193 = sand.u32 %s71, 1
        %s194 = smul.addr %s193, 8
        %s195 = scalar_lea.vmem [#allocation2], %s194
        // Predicated region
        $region29: #{tpu_custom_call.1} parent=27 // pred_check
          %p196 = pneg %p81
        $region30: #{tpu_custom_call.1} parent=27 // pred_check_branch
          %198 = sbr.rel (%p196) target = $region32
        $region31: #{tpu_custom_call.1} parent=27 // pred_region
          %s200 = ssub.s32 128, 128
          %201 = vsyncadd %s192, %s200
          %s202 = smul.addr %s16, 128
          %s203 = scalar_lea.hbm %s2, %s202
          %s205 = sshll.u32 %s195, 4
          %s206 = int_to_ptr.vmem [resolvable:$true] %s205
          %208 = dma.vmem_to_hbm [thread:$0]  %s206, 128, %s203, %s192
        $region32: #{tpu_custom_call.1} parent=27 // pred_fallthru
          _
      $region28: #{tpu_custom_call.1} parent=5 // pred_fallthru
        _
      %p209 = scmp.le.s32.totalorder 2, %s11
      // Predicated region
      $region33: #{tpu_custom_call.1} parent=5 // pred_check
        %p210 = pneg %p209
      $region34: #{tpu_custom_call.1} parent=5 // pred_check_branch
        %212 = sbr.rel (%p210) target = $region36
      $region35: #{tpu_custom_call.1} parent=5 // pred_region
        %s213 = ssub.s32 %s11, 2
        // Predicated region
        $region37: #{tpu_custom_call.1} parent=35 // pred_check
          %p214 = pneg %p87
        $region38: #{tpu_custom_call.1} parent=35 // pred_check_branch
          %216 = sbr.rel (%p214) target = $region40
        $region39: #{tpu_custom_call.1} parent=35 // pred_region
          %s217 = sand.u32 %s72, 1
          %s218 = scalar_lea.sflag [#allocation3], %s217
          %s219 = sand.u32 %s72, 1
          %s220 = smul.addr %s219, 8
          %s221 = scalar_lea.vmem [#allocation2], %s220
          %222 = dma.done %s218, 128
        $region40: #{tpu_custom_call.1} parent=35 // pred_fallthru
          _
      $region36: #{tpu_custom_call.1} parent=5 // pred_fallthru
        _
    $region6: #{tpu_custom_call.1} parent=1 // loop_footer
      %s15 = sadd.s32 1, %s11
    $region7: #{tpu_custom_call.1} parent=1 // loop_footer_branch
      %10 = sbr.rel target = $region3
    $region8: #{tpu_custom_call.1} parent=1 // loop_exit
      _
    %223 = vsyncpa [#allocation3], 1
    %s224 = scalar_lea.sflag [#allocation3], 1
    %225 = vsyncpa %s224, 1

</llo_original>
